<compile_context>
chip_gen: v7x
topology: tpu7x:2x2x1
jax: 0.10.0
libtpu: 0.0.40
codegen_flags: <defaults>
</compile_context>

<pallas_src>
import functools
import math

import jax
import jax.numpy as jnp
from jax.experimental import pallas as pl
from jax.experimental.pallas import tpu as pltpu


# ----------------------------------------------------------------------------
# Pallas kernel: elementwise hot path of AdaRoundFakeQuant.forward
# ----------------------------------------------------------------------------
def _adaround_kernel(w_ref, s_ref, z_ref, h_ref, o_ref, *,
                     zeta, gamma, quant_min, quant_max, hard_round):
    w = w_ref[...]            # (TO, TK) weight tile
    s = s_ref[...]            # (TO, 1)  per-channel scale (clipped >= 1e-10)
    z = z_ref[...]            # (TO, 1)  per-channel zero point (rounded/clipped)
    h = h_ref[...]            # (TO, TK) learnable rounding logits ("hidden")

    # Exact per-channel reciprocal: O(1) column ops instead of a full-tile
    # divide.  Do NOT use pl.reciprocal(approx=True) here (floor boundaries).
    inv_s = 1.0 / s

    if hard_round:
        # round(clip(sigmoid(h)*(zeta-gamma)+gamma, 0, 1)) == (h > 0)
        # for zeta=1.1, gamma=-0.1; only h == 0 exactly differs (banker's).
        rect = (h > 0.0).astype(w.dtype)
    else:
        rect = jnp.clip(jax.nn.sigmoid(h) * (zeta - gamma) + gamma, 0.0, 1.0)

    q = jnp.floor(w * inv_s) + z + rect
    q = jnp.clip(q, float(quant_min), float(quant_max))

    sz = s * z                # (TO, 1) column, cheap
    o_ref[...] = s * q - sz


# ----------------------------------------------------------------------------
# Wrapper: padding to lane-dense tiles + gridded pallas_call
# ----------------------------------------------------------------------------
def _pad2d(x, o_pad, k_pad, value=0.0):
    o, k = x.shape
    if o == o_pad and k == k_pad:
        return x
    return jnp.pad(x, ((0, o_pad - o), (0, k_pad - k)), constant_values=value)


def adaround_fake_quant(weight_2d, scale_col, zp_col, hidden_2d, *,
                        quant_min, quant_max, gamma=-0.1, zeta=1.1,
                        hard_round=False, tile_o=None, tile_k=None):
    """weight_2d/hidden_2d: (O, K) f32; scale_col/zp_col: (O, 1) f32."""
    O, K = weight_2d.shape

    # Lane dim -> multiple of 128, sublane dim -> multiple of 8.
    k_pad = max(128, math.ceil(K / 128) * 128)
    o_pad = max(8, math.ceil(O / 8) * 8)

    # Default production-sized tiles; clamp to the (padded) array.
    if tile_o is None:
        tile_o = min(o_pad, 512)
    if tile_k is None:
        tile_k = min(k_pad, 1024)
    # Grow padding so tiles divide evenly (avoids partial-block edge cases).
    o_pad = math.ceil(o_pad / tile_o) * tile_o
    k_pad = math.ceil(k_pad / tile_k) * tile_k

    # Pad: weight/hidden with 0 (sigmoid(0)=0.5, harmless, sliced off later);
    # scale with 1.0 so 1/s stays finite; zero_point with 0.
    w_p = _pad2d(weight_2d, o_pad, k_pad, 0.0)
    h_p = _pad2d(hidden_2d, o_pad, k_pad, 0.0)
    s_p = _pad2d(scale_col, o_pad, 1, 1.0)
    z_p = _pad2d(zp_col, o_pad, 1, 0.0)

    grid = (o_pad // tile_o, k_pad // tile_k)

    kernel = functools.partial(
        _adaround_kernel,
        zeta=float(zeta), gamma=float(gamma),
        quant_min=int(quant_min), quant_max=int(quant_max),
        hard_round=bool(hard_round),
    )

    out_p = pl.pallas_call(
        kernel,
        out_shape=jax.ShapeDtypeStruct((o_pad, k_pad), weight_2d.dtype),
        grid=grid,
        in_specs=[
            pl.BlockSpec((tile_o, tile_k), lambda i, j: (i, j)),   # weight
            pl.BlockSpec((tile_o, 1),      lambda i, j: (i, 0)),   # scale col
            pl.BlockSpec((tile_o, 1),      lambda i, j: (i, 0)),   # zp col
            pl.BlockSpec((tile_o, tile_k), lambda i, j: (i, j)),   # hidden
        ],
        out_specs=pl.BlockSpec((tile_o, tile_k), lambda i, j: (i, j)),
        compiler_params=pltpu.CompilerParams(
            dimension_semantics=("parallel", "parallel")),
    )(w_p, s_p, z_p, h_p)

    return out_p[:O, :K]


# ----------------------------------------------------------------------------
# Module glue (parameter setup mirroring AdaRoundFakeQuant.__init__)
# ----------------------------------------------------------------------------
def init_adaround_params(weight, scale, zero_point, quant_min, quant_max,
                         gamma=-0.1, zeta=1.1):
    """Returns (scale, zero_point, hidden) exactly as the PyTorch __init__."""
    scale = jnp.clip(scale, 1e-10)
    max_zero_point = int(quant_max - quant_min)
    zero_point = jnp.clip(jnp.round(zero_point), 0, max_zero_point)
    # _init_v
    weight_round = weight / scale
    weight_floor = jnp.floor(weight / scale)
    bound = weight_round - weight_floor
    hidden = -jnp.log((zeta - gamma) / (bound - gamma) - 1.0)
    return scale, zero_point, hidden


def adaround_reference(weight, scale, zero_point, hidden, quant_min, quant_max,
                       gamma=-0.1, zeta=1.1, hard_round=False):
    """Pure-JAX reference of the PyTorch forward (for verification)."""
    rect = jnp.clip(jax.nn.sigmoid(hidden) * (zeta - gamma) + gamma, 0.0, 1.0)
    if hard_round:
        rect = jnp.round(rect)
    w = jnp.floor(weight / scale) + zero_point + rect
    return scale * (jnp.clip(w, quant_min, quant_max) - zero_point)


# ----------------------------------------------------------------------------
# Test driver
# ----------------------------------------------------------------------------
def _run_case(key, O, C, KH, KW, quant_min, quant_max, gamma, zeta,
              tile_o=None, tile_k=None):
    kw, ks, kz = jax.random.split(key, 3)
    weight = jax.random.normal(kw, (O, C, KH, KW), dtype=jnp.float32) * 0.5
    scale = jax.random.uniform(ks, (O, 1, 1, 1), dtype=jnp.float32,
                               minval=0.01, maxval=0.05)
    zero_point = jax.random.uniform(kz, (O, 1, 1, 1), dtype=jnp.float32,
                                    minval=0.0, maxval=10.0)

    # __init__ semantics (parameter preprocessing + hidden init)
    scale, zero_point, hidden = init_adaround_params(
        weight, scale, zero_point, quant_min, quant_max, gamma, zeta)

    K = C * KH * KW
    w2d = weight.reshape(O, K)
    h2d = hidden.reshape(O, K)
    s_col = scale.reshape(O, 1)
    z_col = zero_point.reshape(O, 1)

    for hard_round in (False, True):
        out2d = adaround_fake_quant(
            w2d, s_col, z_col, h2d,
            quant_min=quant_min, quant_max=quant_max,
            gamma=gamma, zeta=zeta, hard_round=hard_round,
            tile_o=tile_o, tile_k=tile_k)
        out2d = jax.block_until_ready(out2d)
        out = out2d.reshape(O, C, KH, KW)

        ref = adaround_reference(weight, scale, zero_point, hidden,
                                 quant_min, quant_max, gamma, zeta, hard_round)
        assert jnp.allclose(out, ref, atol=1e-5, rtol=1e-5), (
            f"mismatch (O={O}, C={C}, hard_round={hard_round})")


if __name__ == "__main__":
    quant_min, quant_max = -128, 127
    gamma, zeta = -0.1, 1.1
    key = jax.random.PRNGKey(0)
    k1, k2 = jax.random.split(key)

    # Small conv-style weight (OIHW): single-tile path (K=36 padded to 128).
    _run_case(k1, O=8, C=4, KH=3, KW=3,
              quant_min=quant_min, quant_max=quant_max,
              gamma=gamma, zeta=zeta)

    # Slightly larger case with tiny explicit tiles to exercise the 2-D grid
    # (O=32, K=144 -> padded (32, 256), grid (4, 2) with (8, 128) tiles).
    _run_case(k2, O=32, C=16, KH=3, KW=3,
              quant_min=quant_min, quant_max=quant_max,
              gamma=gamma, zeta=zeta, tile_o=8, tile_k=128)

    print("KERNEL_OK")
</pallas_src>

<mosaic_0001>
module attributes {stable_mosaic.version = 11 : i64} {
  func.func @_adaround_kernel(%arg0: i32, %arg1: i32, %arg2: memref<8x128xf32, #tpu.memory_space<vmem>>, %arg3: memref<8x1xf32, #tpu.memory_space<vmem>>, %arg4: memref<8x1xf32, #tpu.memory_space<vmem>>, %arg5: memref<8x128xf32, #tpu.memory_space<vmem>>, %arg6: memref<8x128xf32, #tpu.memory_space<vmem>>) attributes {dimension_semantics = [#tpu.dimension_semantics<parallel>, #tpu.dimension_semantics<parallel>], iteration_bounds = array<i64: 1, 1>, scalar_prefetch = 0 : i64, scratch_operands = 0 : i64, tpu.core_type = #tpu.core_type<tc>, window_params = [{transform_indices = @transform_0, window_bounds = array<i64: 8, 128>}, {transform_indices = @transform_1, window_bounds = array<i64: 8, 1>}, {transform_indices = @transform_2, window_bounds = array<i64: 8, 1>}, {transform_indices = @transform_3, window_bounds = array<i64: 8, 128>}, {transform_indices = @transform_4, window_bounds = array<i64: 8, 128>}]} {
    %c0 = arith.constant 0 : index
    %c0_0 = arith.constant 0 : index
    %0 = vector.load %arg2[%c0, %c0_0] : memref<8x128xf32, #tpu.memory_space<vmem>>, vector<8x128xf32>
    %c0_1 = arith.constant 0 : index
    %c0_2 = arith.constant 0 : index
    %1 = vector.load %arg3[%c0_1, %c0_2] : memref<8x1xf32, #tpu.memory_space<vmem>>, vector<8x1xf32>
    %c0_3 = arith.constant 0 : index
    %c0_4 = arith.constant 0 : index
    %2 = vector.load %arg4[%c0_3, %c0_4] : memref<8x1xf32, #tpu.memory_space<vmem>>, vector<8x1xf32>
    %c0_5 = arith.constant 0 : index
    %c0_6 = arith.constant 0 : index
    %3 = vector.load %arg5[%c0_5, %c0_6] : memref<8x128xf32, #tpu.memory_space<vmem>>, vector<8x128xf32>
    %cst = arith.constant 1.000000e+00 : f32
    %4 = vector.broadcast %cst : f32 to vector<8x1xf32>
    %5 = arith.divf %4, %1 : vector<8x1xf32>
    %6 = arith.negf %3 : vector<8x128xf32>
    %7 = math.exp %6 : vector<8x128xf32>
    %cst_7 = arith.constant 1.000000e+00 : f32
    %8 = vector.broadcast %cst_7 : f32 to vector<8x128xf32>
    %9 = arith.addf %8, %7 : vector<8x128xf32>
    %10 = arith.divf %8, %9 : vector<8x128xf32>
    %cst_8 = arith.constant 1.200000e+00 : f32
    %11 = vector.broadcast %cst_8 : f32 to vector<8x128xf32>
    %12 = arith.mulf %10, %11 : vector<8x128xf32>
    %cst_9 = arith.constant -1.000000e-01 : f32
    %13 = vector.broadcast %cst_9 : f32 to vector<8x128xf32>
    %14 = arith.addf %12, %13 : vector<8x128xf32>
    %cst_10 = arith.constant 0.000000e+00 : f32
    %cst_11 = arith.constant 1.000000e+00 : f32
    %15 = vector.broadcast %cst_10 : f32 to vector<8x128xf32>
    %16 = arith.maximumf %15, %14 : vector<8x128xf32>
    %17 = vector.broadcast %cst_11 : f32 to vector<8x128xf32>
    %18 = arith.minimumf %17, %16 : vector<8x128xf32>
    %19 = vector.broadcast %5 : vector<8x1xf32> to vector<8x128xf32>
    %20 = arith.mulf %0, %19 : vector<8x128xf32>
    %21 = math.floor %20 : vector<8x128xf32>
    %22 = vector.broadcast %2 : vector<8x1xf32> to vector<8x128xf32>
    %23 = arith.addf %21, %22 : vector<8x128xf32>
    %24 = arith.addf %23, %18 : vector<8x128xf32>
    %cst_12 = arith.constant -1.280000e+02 : f32
    %cst_13 = arith.constant 1.270000e+02 : f32
    %25 = vector.broadcast %cst_12 : f32 to vector<8x128xf32>
    %26 = arith.maximumf %25, %24 : vector<8x128xf32>
    %27 = vector.broadcast %cst_13 : f32 to vector<8x128xf32>
    %28 = arith.minimumf %27, %26 : vector<8x128xf32>
    %29 = arith.mulf %1, %2 : vector<8x1xf32>
    %30 = vector.broadcast %1 : vector<8x1xf32> to vector<8x128xf32>
    %31 = arith.mulf %30, %28 : vector<8x128xf32>
    %32 = vector.broadcast %29 : vector<8x1xf32> to vector<8x128xf32>
    %33 = arith.subf %31, %32 : vector<8x128xf32>
    %c0_14 = arith.constant 0 : index
    %c0_15 = arith.constant 0 : index
    %34 = vector.load %arg6[%c0_14, %c0_15] : memref<8x128xf32, #tpu.memory_space<vmem>>, vector<8x128xf32>
    tpu.vector_store %arg6[%c0_14, %c0_15], %33 {strides = array<i32>} : memref<8x128xf32, #tpu.memory_space<vmem>>, vector<8x128xf32>,
    return
  }
  func.func @transform_0(%arg0: i32, %arg1: i32) -> (i32, i32) {
    %c0_i32 = arith.constant 0 : i32
    return %arg0, %arg1 : i32, i32
  }
  func.func @transform_1(%arg0: i32, %arg1: i32) -> (i32, i32) {
    %c0_i32 = arith.constant 0 : i32
    %c0_i32_0 = arith.constant 0 : i32
    return %arg0, %c0_i32 : i32, i32
  }
  func.func @transform_2(%arg0: i32, %arg1: i32) -> (i32, i32) {
    %c0_i32 = arith.constant 0 : i32
    %c0_i32_0 = arith.constant 0 : i32
    return %arg0, %c0_i32 : i32, i32
  }
  func.func @transform_3(%arg0: i32, %arg1: i32) -> (i32, i32) {
    %c0_i32 = arith.constant 0 : i32
    return %arg0, %arg1 : i32, i32
  }
  func.func @transform_4(%arg0: i32, %arg1: i32) -> (i32, i32) {
    %c0_i32 = arith.constant 0 : i32
    return %arg0, %arg1 : i32, i32
  }
}

</mosaic_0001>

<llo_original>
// kernel: tpu_custom_call.1
$region0: #{tpu_custom_call.1}
  #allocation0 [shape = 'u32[]', space=smem, size = 0x4, offset = 0x4, fixed_abs, tag = 'smem constant byte address 0x4 - core index']
  #allocation1 [shape = 'u32[144,128]{1,0:T(1,128)}', space=vmem, size = 0x12000, scoped, tag = 'internal scratch']
  %s0 = inlined_call_operand.vmem [shape: f32[8,128], index: 0, kind: input, shape index: {}]
  %s1 = inlined_call_operand.vmem [shape: f32[8,1], index: 1, kind: input, shape index: {}]
  %s2 = inlined_call_operand.vmem [shape: f32[8,1], index: 2, kind: input, shape index: {}]
  %s3 = inlined_call_operand.vmem [shape: f32[8,128], index: 3, kind: input, shape index: {}]
  %s4 = inlined_call_operand.hbm [shape: f32[8,128], index: 4, kind: output, shape index: {}]
  %s5 = sld [smem:[#allocation0]]
  $region26: #{tpu_custom_call.1} parent=0
    _
  %s7 = ssub.s32 1, %s5
  %s8 = scalar_select 0, %s7, %s5
  $region1: #{tpu_custom_call.1} parent=0
    #allocation2 [shape = 'u8[4096]{0}', space=vmem, size = 0x1000, scoped, tag = 'output window, operand 0, single buffered']
    #allocation3 [shape = 's32[1]{0}', space=sflag, size = 0x4, scoped, tag = 'scoped memory for tpu_custom_call.1']
    %9 = vsyncpa [#allocation3], 0
    // Predicated region
    $region2: #{tpu_custom_call.1} parent=1 // pred_check
      _
    $region3: #{tpu_custom_call.1} parent=1 // pred_check_branch
      %11 = sbr.rel (0) target = $region5
    $region4: #{tpu_custom_call.1} parent=1 // pred_region
      _
    $region5: #{tpu_custom_call.1} parent=1 // pred_fallthru
      _
    // Predicated region
    $region6: #{tpu_custom_call.1} parent=1 // pred_check
      _
    $region7: #{tpu_custom_call.1} parent=1 // pred_check_branch
      %13 = sbr.rel (0) target = $region9
    $region8: #{tpu_custom_call.1} parent=1 // pred_region
      _
    $region9: #{tpu_custom_call.1} parent=1 // pred_fallthru
      _
    // Predicated region
    $region10: #{tpu_custom_call.1} parent=1 // pred_check
      _
    $region11: #{tpu_custom_call.1} parent=1 // pred_check_branch
      %15 = sbr.rel (0) target = $region13
    $region12: #{tpu_custom_call.1} parent=1 // pred_region
      _
    $region13: #{tpu_custom_call.1} parent=1 // pred_fallthru
      _
    // Predicated region
    $region14: #{tpu_custom_call.1} parent=1 // pred_check
      _
    $region15: #{tpu_custom_call.1} parent=1 // pred_check_branch
      %17 = sbr.rel (0) target = $region17
    $region16: #{tpu_custom_call.1} parent=1 // pred_region
      _
    $region17: #{tpu_custom_call.1} parent=1 // pred_fallthru
      _
    %v18 = vld [vmem:[%s0] sm:$0xff]
    %v19 = vld [vmem:[%s1] sm:$0xff]
    %v20 = vld [vmem:[%s2] sm:$0xff]
    %v21 = vld [vmem:[%s3] sm:$0xff]
    %v22 = vrcp.pop %v19
    %v23 = vmul.f32 1.0, %v22
    %v24 = vxor.u32 %v21, 2147483648
    %v25 = vmul.f32 %v24, 1.442695
    %v26 = vpow.pop %v25
    %v27 = vadd.f32 %v26, 1.0
    %v28 = vrcp.pop %v27
    %v29 = vmul.f32 1.0, %v28
    %v30 = vmul.f32 %v29, 1.2
    %v31 = vadd.f32 %v30, -0.1
    %v32 = vmax.f32 %v31, 0.0
    %v33 = vmin.f32 %v32, 1.0
    %35 = vset.pattern.permute.xlu0 0
    %36 = vperm.xlu0 %35, %v23
    %v37 = vpop.permute.xlu0 %36
    %v39 = vmul.f32 %v18, %v37
    %v40 = vfloor.f32 %v39
    %42 = vset.pattern.permute.xlu0 0
    %43 = vperm.xlu0 %42, %v20
    %v44 = vpop.permute.xlu0 %43
    %v46 = vadd.f32 %v40, %v44
    %v47 = vadd.f32 %v46, %v33
    %v48 = vmax.f32 %v47, -128.0
    %v49 = vmin.f32 %v48, 127.0
    %v50 = vmul.f32 %v19, %v20
    %52 = vset.pattern.permute.xlu0 0
    %53 = vperm.xlu0 %52, %v19
    %v54 = vpop.permute.xlu0 %53
    %v56 = vmul.f32 %v54, %v49
    %58 = vset.pattern.permute.xlu0 0
    %59 = vperm.xlu0 %58, %v50
    %v60 = vpop.permute.xlu0 %59
    %v62 = vsub.f32 %v56, %v60
    %63 = vst [vmem:[#allocation2] sm:$0xff] %v62
    // Predicated region
    $region18: #{tpu_custom_call.1} parent=1 // pred_check
      _
    $region19: #{tpu_custom_call.1} parent=1 // pred_check_branch
      %65 = sbr.rel (0) target = $region21
    $region20: #{tpu_custom_call.1} parent=1 // pred_region
      %s67 = ssub.s32 128, 128
      %68 = vsyncadd [#allocation3], %s67
      %s70 = sshll.u32 [#allocation2], 4
      %s71 = int_to_ptr.vmem [resolvable:$true] %s70
      %73 = dma.vmem_to_hbm [thread:$0]  %s71, 128, %s4, [#allocation3]
    $region21: #{tpu_custom_call.1} parent=1 // pred_fallthru
      _
    // Predicated region
    $region22: #{tpu_custom_call.1} parent=1 // pred_check
      _
    $region23: #{tpu_custom_call.1} parent=1 // pred_check_branch
      %75 = sbr.rel (0) target = $region25
    $region24: #{tpu_custom_call.1} parent=1 // pred_region
      %76 = dma.done [#allocation3], 128
    $region25: #{tpu_custom_call.1} parent=1 // pred_fallthru
      _
    %77 = vsyncpa [#allocation3], 1

</llo_original>
